<compile_context>
chip_gen: v5e
topology: v5e:2x2
jax: 0.10.0
libtpu: 0.0.40
codegen_flags: <defaults>
</compile_context>

<pallas_src>
import functools

import jax
import jax.numpy as jnp
import numpy as np
from jax.experimental import pallas as pl
from jax.experimental.pallas import tpu as pltpu

LANE = 128
SUBLANE = 8


def _round_up(x: int, m: int) -> int:
    return ((x + m - 1) // m) * m


# ----------------------------------------------------------------------------
# Parameterization logic (mirrors DeepNN.__init__ init_std / param_multiplier)
# ----------------------------------------------------------------------------
def deepnn_init_config(d: int, hidden_size: int, depth: int, mode: str):
    """Returns (layer_shapes, init_stds, param_multipliers) for all linears."""
    shapes, stds, mults = [], [], []
    prev_dim = d
    for layer_idx in range(depth):
        is_embedding = layer_idx == 0
        if mode.startswith("standard"):
            init_std = 1.0 if is_embedding else 1.0 / np.sqrt(hidden_size)
            pm = 1.0
        elif mode.startswith("ntk"):
            init_std = 1.0
            pm = 1.0 if is_embedding else 1.0 / np.sqrt(hidden_size)
        elif mode.startswith("mup"):
            init_std = 1.0 / np.sqrt(hidden_size)
            pm = np.sqrt(hidden_size) if is_embedding else 1.0
        elif mode.startswith("mfp"):
            init_std = 1.0
            pm = 1.0 if is_embedding else 1.0 / np.sqrt(hidden_size)
        else:
            raise ValueError(mode)
        shapes.append((hidden_size, prev_dim))  # PyTorch (out, in) convention
        stds.append(float(init_std))
        mults.append(float(pm))
        prev_dim = hidden_size

    # final readout layer: (1, hidden_size)
    if mode.startswith("standard"):
        init_std, pm = 1.0 / np.sqrt(hidden_size), 1.0
    elif mode.startswith("ntk"):
        init_std, pm = 1.0, 1.0 / np.sqrt(hidden_size)
    elif mode.startswith("mup"):
        init_std, pm = 1.0 / np.sqrt(hidden_size), 1.0 / np.sqrt(hidden_size)
    elif mode.startswith("mfp"):
        init_std, pm = 1.0, 1.0 / hidden_size
    shapes.append((1, prev_dim))
    stds.append(float(init_std))
    mults.append(float(pm))
    return shapes, stds, mults


def init_deepnn_params(key, d, hidden_size, depth, mode):
    """Deterministic weights: W ~ N(0,1) * init_std, shape (out, in)."""
    shapes, stds, mults = deepnn_init_config(d, hidden_size, depth, mode)
    weights = []
    for shape, std in zip(shapes, stds):
        key, sub = jax.random.split(key)
        weights.append(jax.random.normal(sub, shape, dtype=jnp.float32) * std)
    return weights, mults


# ----------------------------------------------------------------------------
# One-time parameter preparation (outside the forward path)
# ----------------------------------------------------------------------------
def prepare_deepnn_params(weights, multipliers, gamma, compute_dtype=jnp.bfloat16):
    """Fold param multipliers (+ 1/gamma), transpose to (in, out), zero-pad the
    output dim to a lane multiple, and cast hidden-layer weights to the MXU
    compute dtype. Done once, NOT per forward call. The embedding weight keeps
    its true K = d (no zero-padded MXU K work on the first layer)."""
    depth = len(weights) - 1
    hidden, d = weights[0].shape  # PyTorch (out, in)
    h_pad = _round_up(hidden, LANE)

    hidden_wts = []
    for i in range(depth):
        w = jnp.asarray(weights[i], jnp.float32) * float(multipliers[i])  # (out, in)
        wt = w.T                                                          # (in, out)
        k = d if i == 0 else h_pad
        wp = jnp.zeros((k, h_pad), jnp.float32)
        wp = wp.at[: wt.shape[0], : wt.shape[1]].set(wt)
        hidden_wts.append(wp.astype(compute_dtype))

    # readout stays f32 in HBM/VMEM (tiny); fold multiplier and 1/gamma.
    w_last = jnp.asarray(weights[depth], jnp.float32) * (
        float(multipliers[depth]) / float(gamma)
    )  # (1, hidden)
    readout = jnp.zeros((1, h_pad), jnp.float32).at[:, :hidden].set(w_last)

    return dict(
        depth=depth, d=d, hidden=hidden, hidden_pad=h_pad,
        hidden_wts=tuple(hidden_wts), readout=readout,
        compute_dtype=compute_dtype,
    )


# ----------------------------------------------------------------------------
# Pallas kernel: one batch tile of the full MLP per grid step.
# ----------------------------------------------------------------------------
def _mlp_kernel(*refs, depth: int, compute_dtype):
    # refs = (x_ref, w0..w_{depth-1}, readout_ref, out_ref)
    x_ref = refs[0]
    w_refs = refs[1 : 1 + depth]
    r_ref = refs[1 + depth]
    out_ref = refs[-1]

    h = x_ref[...].astype(compute_dtype)  # (tile_m, d) bf16
    for i in range(depth):
        w = w_refs[i][...]  # (K, h_pad) bf16, multipliers pre-folded
        h = jnp.dot(h, w, preferred_element_type=jnp.float32)
        # ReLU, immediately back to the compute dtype so only one activation
        # copy stays live (the next matmul needs bf16 anyway).
        h = jnp.maximum(h, 0.0).astype(compute_dtype)

    # Readout (out_features == 1), 1/gamma pre-folded into r_ref.
    # 'q @ k.T'-style contraction -> lane-dense (1, tile_m) row, so the output
    # writeback is 4 bytes per result instead of a broadcast slab.
    r = r_ref[...].astype(compute_dtype)  # (1, h_pad)
    out_ref[...] = jnp.einsum(
        "ok,mk->om", r, h, preferred_element_type=jnp.float32
    )


# ----------------------------------------------------------------------------
# Tiling / VMEM helpers
# ----------------------------------------------------------------------------
def _choose_tiling(batch: int, tile_m: int):
    """Returns (tile_m, num_tiles, batch_pad) respecting the (8,128) rules and
    preferring an even number of >=128-row tiles so both v7x TCs get work."""
    bp8 = _round_up(batch, SUBLANE)
    tile_m = max(LANE, _round_up(int(tile_m), LANE))
    if bp8 <= tile_m:
        if batch >= 2 * LANE:
            # split into two tiles so the 'parallel' axis feeds both v7x cores
            tile_m = _round_up(pl.cdiv(batch, 2), LANE)
        else:
            # single tile == full array, so any multiple of 8 is legal
            return bp8, 1, bp8
    num_tiles = pl.cdiv(batch, tile_m)
    if num_tiles > 1 and num_tiles % 2 == 1:
        alt = _round_up(pl.cdiv(batch, num_tiles + 1), LANE)
        if alt >= LANE and pl.cdiv(batch, alt) % 2 == 0:
            tile_m = alt
            num_tiles = pl.cdiv(batch, alt)
    return tile_m, num_tiles, num_tiles * tile_m


def _vmem_tile_bytes(shape, dtype) -> int:
    """Padded VMEM footprint of one buffer of `shape` / `dtype`."""
    itemsize = jnp.dtype(dtype).itemsize
    packing = max(1, 4 // itemsize)  # sub-32-bit dtypes pack along sublanes
    rows = _round_up(shape[-2], SUBLANE * packing) if len(shape) >= 2 else 1
    cols = _round_up(shape[-1], LANE)
    lead = int(np.prod(shape[:-2])) if len(shape) > 2 else 1
    return lead * rows * cols * itemsize


def _vmem_capacity_bytes() -> int:
    try:
        info = pltpu.get_tpu_info()
        for name in ("vmem_capacity_bytes", "vmem_bytes", "vmem_size_bytes"):
            v = getattr(info, name, None)
            if v:
                return int(v)
    except Exception:
        pass
    return 64 << 20  # conservative fallback (v7x-sized)


# ----------------------------------------------------------------------------
# Forward wrapper
# ----------------------------------------------------------------------------
def deepnn_forward_pallas(x, params, *, tile_m: int = 512, interpret: bool = False):
    """x: (batch, d) float32. params: output of prepare_deepnn_params."""
    depth = params["depth"]
    d = params["d"]
    h_pad = params["hidden_pad"]
    hidden_wts = params["hidden_wts"]
    readout = params["readout"]
    compute_dtype = params["compute_dtype"]

    batch = x.shape[0]
    assert x.shape[1] == d, f"expected x last dim {d}, got {x.shape[1]}"

    tile_m, num_tiles, batch_pad = _choose_tiling(batch, tile_m)

    x = jnp.asarray(x, jnp.float32)
    if batch_pad != batch:
        x_in = jnp.zeros((batch_pad, d), jnp.float32).at[:batch].set(x)
    else:
        x_in = x

    kernel = functools.partial(_mlp_kernel, depth=depth, compute_dtype=compute_dtype)

    # Deeper x pipelining only pays off in the small-hidden, many-tile regime.
    x_bufs = 3 if (h_pad <= 512 and num_tiles >= 3) else 2

    in_specs = [
        pl.BlockSpec((tile_m, d), lambda i: (i, 0), pipeline_mode=pl.Buffered(x_bufs))
    ]
    # constant index_map + single buffer -> weights DMA'd once, VMEM-resident.
    in_specs += [
        pl.BlockSpec(w.shape, lambda i: (0, 0), pipeline_mode=pl.Buffered(1))
        for w in hidden_wts
    ]
    in_specs += [
        pl.BlockSpec(readout.shape, lambda i: (0, 0), pipeline_mode=pl.Buffered(1))
    ]
    out_spec = pl.BlockSpec((1, tile_m), lambda i: (0, i))

    # VMEM budget: single-buffered weights + pipelined x / out tiles + live
    # activations + slack, capped at ~85% of physical capacity (generation
    # aware: ~54 MiB on v7x, ~109 MiB on v5e/v6e).
    w_bytes = sum(_vmem_tile_bytes(w.shape, w.dtype) for w in hidden_wts)
    w_bytes += _vmem_tile_bytes(readout.shape, readout.dtype)
    x_bytes = x_bufs * _vmem_tile_bytes((tile_m, d), jnp.float32)
    o_bytes = 2 * _vmem_tile_bytes((1, tile_m), jnp.float32)
    act_bytes = 3 * tile_m * h_pad * 4
    cap = _vmem_capacity_bytes()
    resident = w_bytes + x_bytes + o_bytes
    if resident + act_bytes > int(cap * 0.9):
        # TODO(synk): per-layer weight streaming (double-buffered DMA /
        # pltpu.emit_pipeline) for weights that don't fit VMEM.
        raise NotImplementedError(
            f"resident VMEM {resident / 2**20:.1f} MiB exceeds ~90% of "
            f"{cap / 2**20:.0f} MiB capacity; weight streaming not implemented"
        )
    vmem_limit = int(max(16 << 20, min(resident + act_bytes + (4 << 20),
                                       int(cap * 0.85))))

    flops = 2 * batch_pad * (d * h_pad + (depth - 1) * h_pad * h_pad + h_pad)
    bytes_accessed = (
        batch_pad * d * 4
        + sum(int(np.prod(w.shape)) * w.dtype.itemsize for w in hidden_wts)
        + int(np.prod(readout.shape)) * 4
        + batch_pad * 4
    )

    out = pl.pallas_call(
        kernel,
        out_shape=jax.ShapeDtypeStruct((1, batch_pad), jnp.float32),
        grid=(num_tiles,),
        in_specs=in_specs,
        out_specs=out_spec,
        compiler_params=pltpu.CompilerParams(
            dimension_semantics=("parallel",),
            vmem_limit_bytes=vmem_limit,
        ),
        cost_estimate=pl.CostEstimate(
            flops=flops, transcendentals=0, bytes_accessed=bytes_accessed
        ),
        interpret=interpret,
    )(x_in, *hidden_wts, readout)

    # row 0 holds the results; matches torch `.squeeze()` of a (batch, 1) output
    return jnp.squeeze(out[0, :batch])


# ----------------------------------------------------------------------------
# Pure-f32 reference (true module semantics) for verification.
# ----------------------------------------------------------------------------
def deepnn_forward_ref(x, weights, multipliers, gamma=1.0):
    h = jnp.asarray(x, jnp.float32)
    depth = len(weights) - 1
    for i in range(depth):
        h = jnp.maximum((h @ jnp.asarray(weights[i], jnp.float32).T)
                        * float(multipliers[i]), 0.0)
    y = (h @ jnp.asarray(weights[depth], jnp.float32).T) * float(multipliers[depth])
    return jnp.squeeze(y) / float(gamma)


if __name__ == "__main__":
    # Small config consistent with the module: d=16, hidden=32, depth=3, mup mode.
    batch, d, hidden, depth = 8, 16, 32, 3
    mode, gamma = "mup", 2.0

    key = jax.random.PRNGKey(0)
    key, xkey = jax.random.split(key)
    x = jax.random.normal(xkey, (batch, d), dtype=jnp.float32)

    weights, multipliers = init_deepnn_params(key, d, hidden, depth, mode)

    # One-time parameter prep (fold multipliers & 1/gamma, transpose, pad, bf16).
    params = prepare_deepnn_params(weights, multipliers, gamma)

    fwd = jax.jit(functools.partial(deepnn_forward_pallas, params=params))
    out = jax.block_until_ready(fwd(x))

    ref = deepnn_forward_ref(x, weights, multipliers, gamma=gamma)
    np.testing.assert_allclose(np.asarray(out), np.asarray(ref), rtol=2e-2, atol=2e-2)

    print("KERNEL_OK")
</pallas_src>

<mosaic_0001>
module attributes {stable_mosaic.version = 11 : i64} {
  func.func @_mlp_kernel(%arg0: i32, %arg1: memref<8x16xf32, #tpu.memory_space<vmem>>, %arg2: memref<16x128xbf16, #tpu.memory_space<vmem>>, %arg3: memref<128x128xbf16, #tpu.memory_space<vmem>>, %arg4: memref<128x128xbf16, #tpu.memory_space<vmem>>, %arg5: memref<1x128xf32, #tpu.memory_space<vmem>>, %arg6: memref<1x8xf32, #tpu.memory_space<vmem>>) attributes {dimension_semantics = [#tpu.dimension_semantics<parallel>], iteration_bounds = array<i64: 1>, scalar_prefetch = 0 : i64, scratch_operands = 0 : i64, tpu.core_type = #tpu.core_type<tc>, window_params = [{pipeline_mode = #tpu.pipeline_mode<double_buffered>, transform_indices = @transform_0, window_bounds = array<i64: 8, 16>}, {pipeline_mode = #tpu.pipeline_mode<synchronous>, transform_indices = @transform_1, window_bounds = array<i64: 16, 128>}, {pipeline_mode = #tpu.pipeline_mode<synchronous>, transform_indices = @transform_2, window_bounds = array<i64: 128, 128>}, {pipeline_mode = #tpu.pipeline_mode<synchronous>, transform_indices = @transform_3, window_bounds = array<i64: 128, 128>}, {pipeline_mode = #tpu.pipeline_mode<synchronous>, transform_indices = @transform_4, window_bounds = array<i64: 1, 128>}, {transform_indices = @transform_5, window_bounds = array<i64: 1, 8>}]} {
    %c0 = arith.constant 0 : index
    %c0_0 = arith.constant 0 : index
    %0 = vector.load %arg1[%c0, %c0_0] : memref<8x16xf32, #tpu.memory_space<vmem>>, vector<8x16xf32>
    %1 = arith.truncf %0 : vector<8x16xf32> to vector<8x16xbf16>
    %c0_1 = arith.constant 0 : index
    %c0_2 = arith.constant 0 : index
    %2 = vector.load %arg2[%c0_1, %c0_2] : memref<16x128xbf16, #tpu.memory_space<vmem>>, vector<16x128xbf16>
    %cst = arith.constant dense<0.000000e+00> : vector<8x128xf32>
    %3 = tpu.matmul %1, %2, %cst {dimension_numbers = #tpu.dot_dimension_numbers<[1], [0], [0], [1], [0, 0, 1, 1], [], []>} : vector<8x16xbf16>, vector<16x128xbf16>, vector<8x128xf32> -> vector<8x128xf32>
    %cst_3 = arith.constant 0.000000e+00 : f32
    %4 = vector.broadcast %cst_3 : f32 to vector<8x128xf32>
    %5 = arith.maximumf %3, %4 : vector<8x128xf32>
    %6 = arith.truncf %5 : vector<8x128xf32> to vector<8x128xbf16>
    %c0_4 = arith.constant 0 : index
    %c0_5 = arith.constant 0 : index
    %7 = vector.load %arg3[%c0_4, %c0_5] : memref<128x128xbf16, #tpu.memory_space<vmem>>, vector<128x128xbf16>
    %cst_6 = arith.constant dense<0.000000e+00> : vector<8x128xf32>
    %8 = tpu.matmul %6, %7, %cst_6 {dimension_numbers = #tpu.dot_dimension_numbers<[1], [0], [0], [1], [0, 0, 1, 1], [], []>} : vector<8x128xbf16>, vector<128x128xbf16>, vector<8x128xf32> -> vector<8x128xf32>
    %cst_7 = arith.constant 0.000000e+00 : f32
    %9 = vector.broadcast %cst_7 : f32 to vector<8x128xf32>
    %10 = arith.maximumf %8, %9 : vector<8x128xf32>
    %11 = arith.truncf %10 : vector<8x128xf32> to vector<8x128xbf16>
    %c0_8 = arith.constant 0 : index
    %c0_9 = arith.constant 0 : index
    %12 = vector.load %arg4[%c0_8, %c0_9] : memref<128x128xbf16, #tpu.memory_space<vmem>>, vector<128x128xbf16>
    %cst_10 = arith.constant dense<0.000000e+00> : vector<8x128xf32>
    %13 = tpu.matmul %11, %12, %cst_10 {dimension_numbers = #tpu.dot_dimension_numbers<[1], [0], [0], [1], [0, 0, 1, 1], [], []>} : vector<8x128xbf16>, vector<128x128xbf16>, vector<8x128xf32> -> vector<8x128xf32>
    %cst_11 = arith.constant 0.000000e+00 : f32
    %14 = vector.broadcast %cst_11 : f32 to vector<8x128xf32>
    %15 = arith.maximumf %13, %14 : vector<8x128xf32>
    %16 = arith.truncf %15 : vector<8x128xf32> to vector<8x128xbf16>
    %c0_12 = arith.constant 0 : index
    %c0_13 = arith.constant 0 : index
    %17 = vector.load %arg5[%c0_12, %c0_13] : memref<1x128xf32, #tpu.memory_space<vmem>>, vector<1x128xf32>
    %18 = arith.truncf %17 : vector<1x128xf32> to vector<1x128xbf16>
    "tpu.trace_start"() <{level = 10 : i32, message = "ok,mk->om"}> : () -> ()
    %cst_14 = arith.constant dense<0.000000e+00> : vector<1x8xf32>
    %19 = tpu.matmul %18, %16, %cst_14 {dimension_numbers = #tpu.dot_dimension_numbers<[1], [1], [0], [0], [0, 0, 1, 0], [], []>} : vector<1x128xbf16>, vector<8x128xbf16>, vector<1x8xf32> -> vector<1x8xf32>
    "tpu.trace_stop"() : () -> ()
    %c0_15 = arith.constant 0 : index
    %c0_16 = arith.constant 0 : index
    %20 = vector.load %arg6[%c0_15, %c0_16] : memref<1x8xf32, #tpu.memory_space<vmem>>, vector<1x8xf32>
    tpu.vector_store %arg6[%c0_15, %c0_16], %19 {strides = array<i32>} : memref<1x8xf32, #tpu.memory_space<vmem>>, vector<1x8xf32>,
    return
  }
  func.func @transform_0(%arg0: i32) -> (i32, i32) {
    %c0_i32 = arith.constant 0 : i32
    %c0_i32_0 = arith.constant 0 : i32
    return %arg0, %c0_i32 : i32, i32
  }
  func.func @transform_1(%arg0: i32) -> (i32, i32) {
    %c0_i32 = arith.constant 0 : i32
    %c0_i32_0 = arith.constant 0 : i32
    %c0_i32_1 = arith.constant 0 : i32
    return %c0_i32, %c0_i32_0 : i32, i32
  }
  func.func @transform_2(%arg0: i32) -> (i32, i32) {
    %c0_i32 = arith.constant 0 : i32
    %c0_i32_0 = arith.constant 0 : i32
    %c0_i32_1 = arith.constant 0 : i32
    return %c0_i32, %c0_i32_0 : i32, i32
  }
  func.func @transform_3(%arg0: i32) -> (i32, i32) {
    %c0_i32 = arith.constant 0 : i32
    %c0_i32_0 = arith.constant 0 : i32
    %c0_i32_1 = arith.constant 0 : i32
    return %c0_i32, %c0_i32_0 : i32, i32
  }
  func.func @transform_4(%arg0: i32) -> (i32, i32) {
    %c0_i32 = arith.constant 0 : i32
    %c0_i32_0 = arith.constant 0 : i32
    %c0_i32_1 = arith.constant 0 : i32
    return %c0_i32, %c0_i32_0 : i32, i32
  }
  func.func @transform_5(%arg0: i32) -> (i32, i32) {
    %c0_i32 = arith.constant 0 : i32
    %c0_i32_0 = arith.constant 0 : i32
    return %c0_i32, %arg0 : i32, i32
  }
}

</mosaic_0001>

<llo_original>
// kernel: deepnn_forward_pallas.1
$region0: #{deepnn_forward_pallas.1}
  #allocation0 [shape = 'u32[]', space=smem, size = 0x4, offset = 0x4, fixed_abs, tag = 'smem constant byte address 0x4 - core index']
  #allocation1 [shape = 'u32[72,128]{1,0:T(1,128)}', space=vmem, size = 0x9000, scoped, tag = 'internal scratch']
  %s0 = inlined_call_operand.hbm [shape: f32[8,16], index: 0, kind: input, shape index: {}]
  %s1 = inlined_call_operand.hbm [shape: bf16[16,128], index: 1, kind: input, shape index: {}]
  %s2 = inlined_call_operand.hbm [shape: bf16[128,128], index: 2, kind: input, shape index: {}]
  %s3 = inlined_call_operand.hbm [shape: bf16[128,128], index: 3, kind: input, shape index: {}]
  %s4 = inlined_call_operand.vmem [shape: f32[1,128], index: 4, kind: input, shape index: {}]
  %s5 = inlined_call_operand.hbm [shape: f32[1,8], index: 5, kind: output, shape index: {}]
  %s6 = sld [smem:[#allocation0]]
  $region46: #{deepnn_forward_pallas.1} parent=0
    _
  %s8 = ssub.s32 1, %s6
  %s9 = scalar_select 0, %s8, %s6
  $region1: #{deepnn_forward_pallas.1} parent=0
    #allocation2 [shape = 'u8[4096]{0}', space=vmem, size = 0x1000, scoped, tag = 'input window, operand 0, single buffered']
    #allocation3 [shape = 's32[1]{0}', space=sflag, size = 0x4, scoped, tag = 'scoped memory for deepnn_forward_pallas.1']
    #allocation4 [shape = 's32[1]{0}', space=sflag, size = 0x4, scoped, tag = 'scoped memory for deepnn_forward_pallas.1']
    #allocation5 [shape = 'u8[4096]{0}', space=vmem, size = 0x1000, scoped, tag = 'input window, operand 1, single buffered']
    #allocation6 [shape = 's32[1]{0}', space=sflag, size = 0x4, scoped, tag = 'scoped memory for deepnn_forward_pallas.1']
    #allocation7 [shape = 'u8[32768]{0}', space=vmem, size = 0x8000, scoped, tag = 'input window, operand 2, single buffered']
    #allocation8 [shape = 'u8[32768]{0}', space=vmem, size = 0x8000, scoped, tag = 'input window, operand 3, single buffered']
    #allocation9 [shape = 's32[1]{0}', space=sflag, size = 0x4, scoped, tag = 'scoped memory for deepnn_forward_pallas.1']
    #allocation10 [shape = 'u8[512]{0}', space=vmem, size = 0x400, scoped, tag = 'output window, operand 0, single buffered']
    %10 = vsyncpa [#allocation3], 0
    %11 = vsyncpa [#allocation6], 0
    %12 = vsyncpa [#allocation9], 0
    %13 = vsyncpa [#allocation4], 0
    // Predicated region
    $region2: #{deepnn_forward_pallas.1} parent=1 // pred_check
      _
    $region3: #{deepnn_forward_pallas.1} parent=1 // pred_check_branch
      %15 = sbr.rel (0) target = $region5
    $region4: #{deepnn_forward_pallas.1} parent=1 // pred_region
      %17 = vsyncadd [#allocation3], 0
      %s19 = sshll.u32 %s0, 4
      %s20 = int_to_ptr.hbm [resolvable:$true] %s19
      %s21 = sshll.u32 [#allocation2], 4
      %s22 = int_to_ptr.vmem [resolvable:$true] %s21
      %24 = dma.hbm_to_vmem [thread:$0]  %s20, 128, %s22, [#allocation3]
    $region5: #{deepnn_forward_pallas.1} parent=1 // pred_fallthru
      _
    // Predicated region
    $region6: #{deepnn_forward_pallas.1} parent=1 // pred_check
      _
    $region7: #{deepnn_forward_pallas.1} parent=1 // pred_check_branch
      %26 = sbr.rel (0) target = $region9
    $region8: #{deepnn_forward_pallas.1} parent=1 // pred_region
      %28 = vsyncadd [#allocation6], 0
      %s29 = sshll.u32 %s1, 4
      %s30 = int_to_ptr.hbm [resolvable:$true] %s29
      %s31 = sshll.u32 [#allocation5], 4
      %s32 = int_to_ptr.vmem [resolvable:$true] %s31
      %37 = dma.hbm_to_vmem [thread:$0]  %s30, 128, %s32, [#allocation6], 64, 64, 4
    $region9: #{deepnn_forward_pallas.1} parent=1 // pred_fallthru
      _
    // Predicated region
    $region10: #{deepnn_forward_pallas.1} parent=1 // pred_check
      _
    $region11: #{deepnn_forward_pallas.1} parent=1 // pred_check_branch
      %39 = sbr.rel (0) target = $region13
    $region12: #{deepnn_forward_pallas.1} parent=1 // pred_region
      %41 = vsyncadd [#allocation6], 0
      %s42 = sshll.u32 %s2, 4
      %s43 = int_to_ptr.hbm [resolvable:$true] %s42
      %s44 = sshll.u32 [#allocation7], 4
      %s45 = int_to_ptr.vmem [resolvable:$true] %s44
      %50 = dma.hbm_to_vmem [thread:$0]  %s43, 1024, %s45, [#allocation6], 64, 64, 4
    $region13: #{deepnn_forward_pallas.1} parent=1 // pred_fallthru
      _
    // Predicated region
    $region14: #{deepnn_forward_pallas.1} parent=1 // pred_check
      _
    $region15: #{deepnn_forward_pallas.1} parent=1 // pred_check_branch
      %52 = sbr.rel (0) target = $region17
    $region16: #{deepnn_forward_pallas.1} parent=1 // pred_region
      %54 = vsyncadd [#allocation9], 0
      %s55 = sshll.u32 %s3, 4
      %s56 = int_to_ptr.hbm [resolvable:$true] %s55
      %s57 = sshll.u32 [#allocation8], 4
      %s58 = int_to_ptr.vmem [resolvable:$true] %s57
      %63 = dma.hbm_to_vmem [thread:$0]  %s56, 1024, %s58, [#allocation9], 64, 64, 4
    $region17: #{deepnn_forward_pallas.1} parent=1 // pred_fallthru
      _
    // Predicated region
    $region18: #{deepnn_forward_pallas.1} parent=1 // pred_check
      _
    $region19: #{deepnn_forward_pallas.1} parent=1 // pred_check_branch
      %65 = sbr.rel (0) target = $region21
    $region20: #{deepnn_forward_pallas.1} parent=1 // pred_region
      _
    $region21: #{deepnn_forward_pallas.1} parent=1 // pred_fallthru
      _
    // Predicated region
    $region22: #{deepnn_forward_pallas.1} parent=1 // pred_check
      _
    $region23: #{deepnn_forward_pallas.1} parent=1 // pred_check_branch
      %67 = sbr.rel (0) target = $region25
    $region24: #{deepnn_forward_pallas.1} parent=1 // pred_region
      %69 = dma.done [#allocation3], 128
    $region25: #{deepnn_forward_pallas.1} parent=1 // pred_fallthru
      _
    // Predicated region
    $region26: #{deepnn_forward_pallas.1} parent=1 // pred_check
      _
    $region27: #{deepnn_forward_pallas.1} parent=1 // pred_check_branch
      %71 = sbr.rel (0) target = $region29
    $region28: #{deepnn_forward_pallas.1} parent=1 // pred_region
      %73 = dma.done [#allocation6], 128
    $region29: #{deepnn_forward_pallas.1} parent=1 // pred_fallthru
      _
    // Predicated region
    $region30: #{deepnn_forward_pallas.1} parent=1 // pred_check
      _
    $region31: #{deepnn_forward_pallas.1} parent=1 // pred_check_branch
      %75 = sbr.rel (0) target = $region33
    $region32: #{deepnn_forward_pallas.1} parent=1 // pred_region
      %77 = dma.done [#allocation6], 1024
    $region33: #{deepnn_forward_pallas.1} parent=1 // pred_fallthru
      _
    // Predicated region
    $region34: #{deepnn_forward_pallas.1} parent=1 // pred_check
      _
    $region35: #{deepnn_forward_pallas.1} parent=1 // pred_check_branch
      %79 = sbr.rel (0) target = $region37
    $region36: #{deepnn_forward_pallas.1} parent=1 // pred_region
      %81 = dma.done [#allocation9], 1024
    $region37: #{deepnn_forward_pallas.1} parent=1 // pred_fallthru
      _
    %v83 = vld [vmem:[#allocation2] sm:$0xff]
    %v84 = vpack.c.bf16 %v83, %v83
    %v85 = vld [vmem:[#allocation5] sm:$0xf]
    %v86 = vld [vmem:[#allocation5 + $0x4] sm:$0xf]
    %v89 = vunpack.c.l.b16 %v85
    %v90 = vunpack.c.l.b16 %v86
    %v91 = vpack.c.b16 %v90, %v89
    %vm93 = vcmask 130048
    %v95 = vsel %vm93, %v84, 0
    %97 = vmatpush.bf16.msra.mxu0 0
    %98 = vmatpush.bf16.msra.mxu0 0
    %99 = vmatpush.bf16.msra.mxu0 0
    %100 = vmatpush.bf16.msra.mxu0 0
    %101 = vmatpush.bf16.msra.mxu0 0
    %102 = vmatpush.bf16.msra.mxu0 0
    %103 = vmatpush.bf16.msra.mxu0 0
    %104 = vmatpush.bf16.msra.mxu0 %v91
    %105 = vmatmul.bf16.gmra.mxu0 %v95
    %v106 = vpop.f32.mrf.mxu0
    %v107 = vadd.f32 0.0, %v106
    %v108 = vpop.f32.mrf.mxu0
    %109 = vdwg.mxu0
    %v110 = vmax.f32 %v107, 0.0
    %v111 = vpack.c.bf16 %v110, %v110
    %v112 = vld [vmem:[#allocation7] sm:$0xf]
    %v113 = vld [vmem:[#allocation7 + $0x4] sm:$0xf]
    %v114 = vld [vmem:[#allocation7 + $0x8] sm:$0xf]
    %v115 = vld [vmem:[#allocation7 + $0xc] sm:$0xf]
    %v116 = vld [vmem:[#allocation7 + $0x10] sm:$0xf]
    %v117 = vld [vmem:[#allocation7 + $0x14] sm:$0xf]
    %v118 = vld [vmem:[#allocation7 + $0x18] sm:$0xf]
    %v119 = vld [vmem:[#allocation7 + $0x1c] sm:$0xf]
    %v120 = vld [vmem:[#allocation7 + $0x20] sm:$0xf]
    %v121 = vld [vmem:[#allocation7 + $0x24] sm:$0xf]
    %v122 = vld [vmem:[#allocation7 + $0x28] sm:$0xf]
    %v123 = vld [vmem:[#allocation7 + $0x2c] sm:$0xf]
    %v124 = vld [vmem:[#allocation7 + $0x30] sm:$0xf]
    %v125 = vld [vmem:[#allocation7 + $0x34] sm:$0xf]
    %v126 = vld [vmem:[#allocation7 + $0x38] sm:$0xf]
    %v127 = vld [vmem:[#allocation7 + $0x3c] sm:$0xf]
    %v144 = vunpack.c.l.b16 %v112
    %v145 = vunpack.c.l.b16 %v113
    %v146 = vunpack.c.l.b16 %v114
    %v147 = vunpack.c.l.b16 %v115
    %v148 = vunpack.c.l.b16 %v116
    %v149 = vunpack.c.l.b16 %v117
    %v150 = vunpack.c.l.b16 %v118
    %v151 = vunpack.c.l.b16 %v119
    %v152 = vunpack.c.l.b16 %v120
    %v153 = vunpack.c.l.b16 %v121
    %v154 = vunpack.c.l.b16 %v122
    %v155 = vunpack.c.l.b16 %v123
    %v156 = vunpack.c.l.b16 %v124
    %v157 = vunpack.c.l.b16 %v125
    %v158 = vunpack.c.l.b16 %v126
    %v159 = vunpack.c.l.b16 %v127
    %v160 = vpack.c.b16 %v145, %v144
    %v161 = vpack.c.b16 %v147, %v146
    %v162 = vpack.c.b16 %v149, %v148
    %v163 = vpack.c.b16 %v151, %v150
    %v164 = vpack.c.b16 %v153, %v152
    %v165 = vpack.c.b16 %v155, %v154
    %v166 = vpack.c.b16 %v157, %v156
    %v167 = vpack.c.b16 %v159, %v158
    %176 = vmatpush.bf16.msra.mxu0 %v167
    %177 = vmatpush.bf16.msra.mxu0 %v166
    %178 = vmatpush.bf16.msra.mxu0 %v165
    %179 = vmatpush.bf16.msra.mxu0 %v164
    %180 = vmatpush.bf16.msra.mxu0 %v163
    %181 = vmatpush.bf16.msra.mxu0 %v162
    %182 = vmatpush.bf16.msra.mxu0 %v161
    %183 = vmatpush.bf16.msra.mxu0 %v160
    %184 = vmatmul.bf16.gmra.mxu0 %v111
    %v185 = vpop.f32.mrf.mxu0
    %v186 = vadd.f32 0.0, %v185
    %v187 = vpop.f32.mrf.mxu0
    %188 = vdwg.mxu0
    %v189 = vmax.f32 %v186, 0.0
    %v190 = vpack.c.bf16 %v189, %v189
    %v191 = vld [vmem:[#allocation8] sm:$0xf]
    %v192 = vld [vmem:[#allocation8 + $0x4] sm:$0xf]
    %v193 = vld [vmem:[#allocation8 + $0x8] sm:$0xf]
    %v194 = vld [vmem:[#allocation8 + $0xc] sm:$0xf]
    %v195 = vld [vmem:[#allocation8 + $0x10] sm:$0xf]
    %v196 = vld [vmem:[#allocation8 + $0x14] sm:$0xf]
    %v197 = vld [vmem:[#allocation8 + $0x18] sm:$0xf]
    %v198 = vld [vmem:[#allocation8 + $0x1c] sm:$0xf]
    %v199 = vld [vmem:[#allocation8 + $0x20] sm:$0xf]
    %v200 = vld [vmem:[#allocation8 + $0x24] sm:$0xf]
    %v201 = vld [vmem:[#allocation8 + $0x28] sm:$0xf]
    %v202 = vld [vmem:[#allocation8 + $0x2c] sm:$0xf]
    %v203 = vld [vmem:[#allocation8 + $0x30] sm:$0xf]
    %v204 = vld [vmem:[#allocation8 + $0x34] sm:$0xf]
    %v205 = vld [vmem:[#allocation8 + $0x38] sm:$0xf]
    %v206 = vld [vmem:[#allocation8 + $0x3c] sm:$0xf]
    %v223 = vunpack.c.l.b16 %v191
    %v224 = vunpack.c.l.b16 %v192
    %v225 = vunpack.c.l.b16 %v193
    %v226 = vunpack.c.l.b16 %v194
    %v227 = vunpack.c.l.b16 %v195
    %v228 = vunpack.c.l.b16 %v196
    %v229 = vunpack.c.l.b16 %v197
    %v230 = vunpack.c.l.b16 %v198
    %v231 = vunpack.c.l.b16 %v199
    %v232 = vunpack.c.l.b16 %v200
    %v233 = vunpack.c.l.b16 %v201
    %v234 = vunpack.c.l.b16 %v202
    %v235 = vunpack.c.l.b16 %v203
    %v236 = vunpack.c.l.b16 %v204
    %v237 = vunpack.c.l.b16 %v205
    %v238 = vunpack.c.l.b16 %v206
    %v239 = vpack.c.b16 %v224, %v223
    %v240 = vpack.c.b16 %v226, %v225
    %v241 = vpack.c.b16 %v228, %v227
    %v242 = vpack.c.b16 %v230, %v229
    %v243 = vpack.c.b16 %v232, %v231
    %v244 = vpack.c.b16 %v234, %v233
    %v245 = vpack.c.b16 %v236, %v235
    %v246 = vpack.c.b16 %v238, %v237
    %255 = vmatpush.bf16.msra.mxu0 %v246
    %256 = vmatpush.bf16.msra.mxu0 %v245
    %257 = vmatpush.bf16.msra.mxu0 %v244
    %258 = vmatpush.bf16.msra.mxu0 %v243
    %259 = vmatpush.bf16.msra.mxu0 %v242
    %260 = vmatpush.bf16.msra.mxu0 %v241
    %261 = vmatpush.bf16.msra.mxu0 %v240
    %262 = vmatpush.bf16.msra.mxu0 %v239
    %263 = vmatmul.bf16.gmra.mxu0 %v190
    %v264 = vpop.f32.mrf.mxu0
    %v265 = vadd.f32 0.0, %v264
    %v266 = vpop.f32.mrf.mxu0
    %267 = vdwg.mxu0
    %v268 = vmax.f32 %v265, 0.0
    %v269 = vpack.c.bf16 %v268, %v268
    %v270 = vld [vmem:[%s4] sm:$0x1]
    %v271 = vpack.c.bf16 %v270, %v270
    %272 = vmatpush.bf16.xpose.msra.mxu0 0
    %273 = vmatpush.bf16.xpose.msra.mxu0 0
    %274 = vmatpush.bf16.xpose.msra.mxu0 0
    %275 = vmatpush.bf16.xpose.msra.mxu0 0
    %276 = vmatpush.bf16.xpose.msra.mxu0 0
    %277 = vmatpush.bf16.xpose.msra.mxu0 0
    %278 = vmatpush.bf16.xpose.msra.mxu0 0
    %279 = vmatpush.bf16.xpose.msra.mxu0 %v269
    %280 = vmatmul.bf16.gmra.mxu0 %v271
    %v281 = vpop.f32.mrf.mxu0
    %v282 = vadd.f32 0.0, %v281
    %v283 = vpop.f32.mrf.mxu0
    %284 = vdwg.mxu0
    %vm285 = vcmask 57344
    %286 = vst.msk [vmem:[#allocation10] sm:$0x1] %vm285, %v282
    // Predicated region
    $region38: #{deepnn_forward_pallas.1} parent=1 // pred_check
      _
    $region39: #{deepnn_forward_pallas.1} parent=1 // pred_check_branch
      %288 = sbr.rel (0) target = $region41
    $region40: #{deepnn_forward_pallas.1} parent=1 // pred_region
      %290 = vsyncadd [#allocation4], 0
      %s292 = sshll.u32 [#allocation10], 4
      %s293 = int_to_ptr.vmem [resolvable:$true] %s292
      %s294 = sshll.u32 %s5, 4
      %s295 = int_to_ptr.hbm [resolvable:$true] %s294
      %297 = dma.vmem_to_hbm [thread:$0]  %s293, 16, %s295, [#allocation4]
    $region41: #{deepnn_forward_pallas.1} parent=1 // pred_fallthru
      _
    // Predicated region
    $region42: #{deepnn_forward_pallas.1} parent=1 // pred_check
      _
    $region43: #{deepnn_forward_pallas.1} parent=1 // pred_check_branch
      %299 = sbr.rel (0) target = $region45
    $region44: #{deepnn_forward_pallas.1} parent=1 // pred_region
      %301 = dma.done [#allocation4], 16
    $region45: #{deepnn_forward_pallas.1} parent=1 // pred_fallthru
      _
    %302 = vsyncpa [#allocation3], 1
    %303 = vsyncpa [#allocation6], 1
    %304 = vsyncpa [#allocation9], 1
    %305 = vsyncpa [#allocation4], 1

</llo_original>
